<compile_context>
chip_gen: v6e
topology: v6e:2x2x1
jax: 0.10.0
libtpu: 0.0.40
codegen_flags: <defaults>
</compile_context>

<pallas_src>
import jax
import jax.numpy as jnp
from jax.experimental import pallas as pl
from jax.experimental.pallas import tpu as pltpu

_SMOOTH = 1e-5


def _bcedice_partials_kernel(pred_ref, tgt_ref, bce_ref, inter_ref, den_ref):
    """One grid step == (batch element n, HW row-tile r).  Fully parallel.

    pred_ref  : (1, C, r_tile, 128) logits, native dtype        (VMEM)
    tgt_ref   : (1, 1, r_tile, 128) raw target                  (VMEM)
    bce_ref   : (1, 1, r_acc, 128) f32 BCE partial sums for this (n, r) tile
    inter_ref : (1, 1, r_acc, 128) f32 sum(p * t) partials
    den_ref   : (1, 1, r_acc, 128) f32 sum(p + t) partials (Dice denominator)
    """
    r_tile = pred_ref.shape[2]
    r_acc = bce_ref.shape[2]

    x = pred_ref[0]                                   # (C, r_tile, 128) native dtype
    # torch.argmax(dim=1) > 0 (first index wins ties)  <=>  max_{c>=1} x[c] > x[0]
    fg = jnp.max(x[1:], axis=0) > x[0]                # (r_tile, 128) bool
    logits = jnp.where(fg, x[1].astype(jnp.float32), 0.0)

    # Binarize target in-kernel (matches (target_mask > 0).float()).
    t = (tgt_ref[0, 0] > 0).astype(jnp.float32)       # (r_tile, 128)

    # Single exp feeds both the BCE log-term and the sigmoid (EUP is the single
    # VLIW transcendental slot on all generations).
    e = jnp.exp(-jnp.abs(logits))
    bce = jnp.maximum(logits, 0.0) - logits * t + jnp.log1p(e)
    inv = pl.reciprocal(1.0 + e, approx=True)         # 1 / (1 + exp(-|x|)), EUP vrcp
    p = jnp.where(logits >= 0.0, inv, e * inv)        # sigmoid(logits)

    if r_tile == r_acc:
        fold = lambda v: v
    else:
        # Layout-preserving fold of the sublane axis into (r_acc, 128) vreg partials
        # (groups of 8 consecutive rows == one f32 vreg -> pure VPU adds, no XLU).
        fold = lambda v: v.reshape(r_tile // r_acc, r_acc, 128).sum(axis=0)

    bce_ref[0, 0] = fold(bce)
    inter_ref[0, 0] = fold(p * t)
    den_ref[0, 0] = fold(p + t)


def _pick_row_tile(rows, bytes_per_row, budget_bytes):
    """Largest legal row tile whose input blocks fit the VMEM budget."""
    cap = max(1, budget_bytes // bytes_per_row)
    if rows <= cap:
        return rows                     # full extent: always layout-legal
    t = (min(cap, rows) // 32) * 32     # multiple of 32 sublanes: legal for f32/bf16/int8
    while t >= 32:
        if rows % t == 0:
            return t
        t -= 32
    return rows                         # no nice divisor: fall back to full extent


def connected_loss_v2(pred_out, target_mask, *, row_tile_budget_bytes=2 << 20):
    """Pallas implementation of the (implementable) forward pass of ConnectedLossV2."""
    N, C, H, W = pred_out.shape
    assert C >= 2, "ConnectedLossV2 requires at least 2 prediction channels"
    HW = H * W
    HW_pad = ((HW + 127) // 128) * 128
    n_pad = HW_pad - HW

    pred = pred_out.reshape(N, C, HW)
    tgt = target_mask.reshape(N, 1, HW)
    if tgt.dtype == jnp.bool_:
        tgt = tgt.astype(jnp.int8)
    if n_pad:
        pred = jnp.pad(pred, ((0, 0), (0, 0), (0, n_pad)))
        tgt = jnp.pad(tgt, ((0, 0), (0, 0), (0, n_pad)))

    rows = HW_pad // 128
    pred = pred.reshape(N, C, rows, 128)      # lane+sublane-dense layout
    tgt = tgt.reshape(N, 1, rows, 128)

    bytes_per_row = 128 * (C * jnp.dtype(pred.dtype).itemsize
                           + jnp.dtype(tgt.dtype).itemsize)
    r_tile = _pick_row_tile(rows, bytes_per_row, row_tile_budget_bytes)
    r_acc = 8 if (r_tile % 8 == 0) else r_tile
    n_tiles = rows // r_tile

    part_shape = jax.ShapeDtypeStruct((N, n_tiles, r_acc, 128), jnp.float32)
    part_spec = pl.BlockSpec((1, 1, r_acc, 128), lambda n, r: (n, r, 0, 0))

    bce_p, inter_p, den_p = pl.pallas_call(
        _bcedice_partials_kernel,
        out_shape=(part_shape, part_shape, part_shape),
        grid_spec=pltpu.PrefetchScalarGridSpec(
            num_scalar_prefetch=0,
            grid=(N, n_tiles),
            in_specs=[
                pl.BlockSpec((1, C, r_tile, 128), lambda n, r: (n, 0, r, 0)),
                pl.BlockSpec((1, 1, r_tile, 128), lambda n, r: (n, 0, r, 0)),
            ],
            out_specs=[part_spec, part_spec, part_spec],
        ),
        compiler_params=pltpu.CompilerParams(
            dimension_semantics=("parallel", "parallel")),
    )(pred, tgt)

    # O(N * n_tiles) scalar combine in the wrapper (kept out of the kernel so the
    # whole grid stays fully parallel across TensorCores).
    bce_sum = jnp.sum(bce_p)
    inter = jnp.sum(inter_p, axis=(1, 2, 3))
    den = jnp.sum(den_p, axis=(1, 2, 3))

    if n_pad:
        # Zero-padded pixels have logits == 0, t == 0 -> bce = log(2), p = 0.5.
        bce_sum = bce_sum - jnp.float32(N * n_pad) * jnp.log(jnp.float32(2.0))
        den = den - jnp.float32(0.5 * n_pad)

    bce_mean = bce_sum / jnp.float32(N * HW)
    dice = (2.0 * inter + _SMOOTH) / (den + _SMOOTH)
    return 0.5 * bce_mean + (1.0 - jnp.sum(dice) / N)


def _reference(pred_out, target_mask):
    """Pure-JAX reference of the same (implementable) forward semantics."""
    N = pred_out.shape[0]
    pred_masks = jnp.argmax(pred_out, axis=1)                        # (N, H, W)
    logits = (pred_out[:, 1:2, :, :] *
              (pred_masks[:, None, :, :] > 0)).astype(jnp.float32)   # (N,1,H,W)
    t = (target_mask > 0).astype(jnp.float32)                        # (N,1,H,W)

    bce = jnp.mean(jnp.maximum(logits, 0.0) - logits * t
                   + jnp.log1p(jnp.exp(-jnp.abs(logits))))
    p = jax.nn.sigmoid(logits).reshape(N, -1)
    tf = t.reshape(N, -1)
    inter = jnp.sum(p * tf, axis=1)
    dice = (2.0 * inter + _SMOOTH) / (jnp.sum(p, axis=1) + jnp.sum(tf, axis=1) + _SMOOTH)
    return 0.5 * bce + (1.0 - jnp.sum(dice) / N)


if __name__ == "__main__":
    key = jax.random.PRNGKey(0)
    k1, k2 = jax.random.split(key)

    # Primary small-shape check (matches the module's expected input layout).
    N, C, H, W = 2, 4, 16, 16
    pred_out = jax.random.normal(k1, (N, C, H, W), dtype=jnp.float32)
    target_mask = jax.random.randint(k2, (N, 1, H, W), 0, 3, dtype=jnp.int32)

    loss = connected_loss_v2(pred_out, target_mask)
    jax.block_until_ready(loss)
    ref = _reference(pred_out, target_mask)
    assert jnp.allclose(loss, ref, rtol=1e-3, atol=1e-3), (loss, ref)

    # Exercise the multi-tile path (n_tiles > 1, sublane fold) with a tiny budget.
    p2 = jax.random.normal(k1, (2, 4, 128, 128), dtype=jnp.float32)
    t2 = jax.random.randint(k2, (2, 1, 128, 128), 0, 3, dtype=jnp.int32)
    l2 = connected_loss_v2(p2, t2, row_tile_budget_bytes=32 * 2560)
    assert jnp.allclose(l2, _reference(p2, t2), rtol=1e-3, atol=1e-3), l2

    # Exercise the lane-padding correction path (H*W not a multiple of 128).
    p3 = jax.random.normal(k1, (2, 4, 30, 30), dtype=jnp.float32)
    t3 = jax.random.randint(k2, (2, 1, 30, 30), 0, 3, dtype=jnp.int32)
    l3 = connected_loss_v2(p3, t3)
    assert jnp.allclose(l3, _reference(p3, t3), rtol=1e-3, atol=1e-3), l3

    print("KERNEL_OK")
</pallas_src>

<mosaic_0001>
module attributes {stable_mosaic.version = 11 : i64} {
  func.func @_bcedice_partials_kernel(%arg0: i32, %arg1: i32, %arg2: memref<1x4x2x128xf32, #tpu.memory_space<vmem>>, %arg3: memref<1x1x2x128xi32, #tpu.memory_space<vmem>>, %arg4: memref<1x1x2x128xf32, #tpu.memory_space<vmem>>, %arg5: memref<1x1x2x128xf32, #tpu.memory_space<vmem>>, %arg6: memref<1x1x2x128xf32, #tpu.memory_space<vmem>>) attributes {dimension_semantics = [#tpu.dimension_semantics<parallel>, #tpu.dimension_semantics<parallel>], iteration_bounds = array<i64: 2, 1>, scalar_prefetch = 0 : i64, scratch_operands = 0 : i64, tpu.core_type = #tpu.core_type<tc>, window_params = [{transform_indices = @transform_0, window_bounds = array<i64: 1, 4, 2, 128>}, {transform_indices = @transform_1, window_bounds = array<i64: 1, 1, 2, 128>}, {transform_indices = @transform_2, window_bounds = array<i64: 1, 1, 2, 128>}, {transform_indices = @transform_3, window_bounds = array<i64: 1, 1, 2, 128>}, {transform_indices = @transform_4, window_bounds = array<i64: 1, 1, 2, 128>}]} {
    %c0 = arith.constant 0 : index
    %c0_0 = arith.constant 0 : index
    %c0_1 = arith.constant 0 : index
    %c0_2 = arith.constant 0 : index
    %0 = vector.load %arg2[%c0, %c0_0, %c0_1, %c0_2] : memref<1x4x2x128xf32, #tpu.memory_space<vmem>>, vector<1x4x2x128xf32>
    %1 = vector.shape_cast %0 : vector<1x4x2x128xf32> to vector<4x2x128xf32>
    %2 = vector.extract_strided_slice %1 {offsets = [1, 0, 0], sizes = [3, 2, 128], strides = [1, 1, 1]} : vector<4x2x128xf32> to vector<3x2x128xf32>
    %cst = arith.constant dense<0xFF800000> : vector<2x128xf32>
    %3 = vector.multi_reduction <maximumf>, %2, %cst [0] : vector<3x2x128xf32> to vector<2x128xf32>
    %4 = vector.extract_strided_slice %1 {offsets = [0, 0, 0], sizes = [1, 2, 128], strides = [1, 1, 1]} : vector<4x2x128xf32> to vector<1x2x128xf32>
    %5 = vector.shape_cast %4 : vector<1x2x128xf32> to vector<2x128xf32>
    %6 = arith.cmpf ogt, %3, %5 : vector<2x128xf32>
    %7 = vector.extract_strided_slice %1 {offsets = [1, 0, 0], sizes = [1, 2, 128], strides = [1, 1, 1]} : vector<4x2x128xf32> to vector<1x2x128xf32>
    %8 = vector.shape_cast %7 : vector<1x2x128xf32> to vector<2x128xf32>
    %cst_3 = arith.constant 0.000000e+00 : f32
    %9 = vector.broadcast %cst_3 : f32 to vector<2x128xf32>
    %10 = arith.select %6, %8, %9 : vector<2x128xi1>, vector<2x128xf32>
    %c0_4 = arith.constant 0 : index
    %c0_5 = arith.constant 0 : index
    %c0_6 = arith.constant 0 : index
    %c0_7 = arith.constant 0 : index
    %11 = vector.load %arg3[%c0_4, %c0_5, %c0_6, %c0_7] : memref<1x1x2x128xi32, #tpu.memory_space<vmem>>, vector<1x1x2x128xi32>
    %12 = vector.shape_cast %11 : vector<1x1x2x128xi32> to vector<2x128xi32>
    %c0_i32 = arith.constant 0 : i32
    %13 = vector.broadcast %c0_i32 : i32 to vector<2x128xi32>
    %14 = arith.cmpi sgt, %12, %13 : vector<2x128xi32>
    %15 = arith.extui %14 : vector<2x128xi1> to vector<2x128xi32>
    %16 = arith.sitofp %15 : vector<2x128xi32> to vector<2x128xf32>
    %17 = math.absf %10 : vector<2x128xf32>
    %cst_8 = arith.constant 0.000000e+00 : f32
    %18 = vector.broadcast %cst_8 : f32 to vector<2x128xf32>
    %19 = arith.subf %18, %17 : vector<2x128xf32>
    %20 = math.exp %19 : vector<2x128xf32>
    %cst_9 = arith.constant 0.000000e+00 : f32
    %21 = vector.broadcast %cst_9 : f32 to vector<2x128xf32>
    %22 = arith.maximumf %10, %21 : vector<2x128xf32>
    %23 = arith.mulf %10, %16 : vector<2x128xf32>
    %24 = arith.subf %22, %23 : vector<2x128xf32>
    %25 = math.log1p %20 : vector<2x128xf32>
    %26 = arith.addf %24, %25 : vector<2x128xf32>
    %cst_10 = arith.constant 1.000000e+00 : f32
    %27 = vector.broadcast %cst_10 : f32 to vector<2x128xf32>
    %28 = arith.addf %27, %20 : vector<2x128xf32>
    %29 = tpu.reciprocal %28 {approx = true} : vector<2x128xf32> -> vector<2x128xf32>
    %cst_11 = arith.constant 0.000000e+00 : f32
    %30 = vector.broadcast %cst_11 : f32 to vector<2x128xf32>
    %31 = arith.cmpf oge, %10, %30 : vector<2x128xf32>
    %32 = arith.mulf %20, %29 : vector<2x128xf32>
    %33 = arith.select %31, %29, %32 : vector<2x128xi1>, vector<2x128xf32>
    %c0_12 = arith.constant 0 : index
    %c0_13 = arith.constant 0 : index
    %c0_14 = arith.constant 0 : index
    %c0_15 = arith.constant 0 : index
    %34 = vector.load %arg4[%c0_12, %c0_13, %c0_14, %c0_15] : memref<1x1x2x128xf32, #tpu.memory_space<vmem>>, vector<1x1x2x128xf32>
    %35 = vector.shape_cast %34 : vector<1x1x2x128xf32> to vector<2x128xf32>
    %36 = vector.shape_cast %26 : vector<2x128xf32> to vector<1x1x2x128xf32>
    tpu.vector_store %arg4[%c0_12, %c0_13, %c0_14, %c0_15], %36 {strides = array<i32>} : memref<1x1x2x128xf32, #tpu.memory_space<vmem>>, vector<1x1x2x128xf32>,
    %37 = arith.mulf %33, %16 : vector<2x128xf32>
    %c0_16 = arith.constant 0 : index
    %c0_17 = arith.constant 0 : index
    %c0_18 = arith.constant 0 : index
    %c0_19 = arith.constant 0 : index
    %38 = vector.load %arg5[%c0_16, %c0_17, %c0_18, %c0_19] : memref<1x1x2x128xf32, #tpu.memory_space<vmem>>, vector<1x1x2x128xf32>
    %39 = vector.shape_cast %38 : vector<1x1x2x128xf32> to vector<2x128xf32>
    %40 = vector.shape_cast %37 : vector<2x128xf32> to vector<1x1x2x128xf32>
    tpu.vector_store %arg5[%c0_16, %c0_17, %c0_18, %c0_19], %40 {strides = array<i32>} : memref<1x1x2x128xf32, #tpu.memory_space<vmem>>, vector<1x1x2x128xf32>,
    %41 = arith.addf %33, %16 : vector<2x128xf32>
    %c0_20 = arith.constant 0 : index
    %c0_21 = arith.constant 0 : index
    %c0_22 = arith.constant 0 : index
    %c0_23 = arith.constant 0 : index
    %42 = vector.load %arg6[%c0_20, %c0_21, %c0_22, %c0_23] : memref<1x1x2x128xf32, #tpu.memory_space<vmem>>, vector<1x1x2x128xf32>
    %43 = vector.shape_cast %42 : vector<1x1x2x128xf32> to vector<2x128xf32>
    %44 = vector.shape_cast %41 : vector<2x128xf32> to vector<1x1x2x128xf32>
    tpu.vector_store %arg6[%c0_20, %c0_21, %c0_22, %c0_23], %44 {strides = array<i32>} : memref<1x1x2x128xf32, #tpu.memory_space<vmem>>, vector<1x1x2x128xf32>,
    return
  }
  func.func @transform_0(%arg0: i32, %arg1: i32) -> (i32, i32, i32, i32) {
    %c0_i32 = arith.constant 0 : i32
    %c0_i32_0 = arith.constant 0 : i32
    %c0_i32_1 = arith.constant 0 : i32
    return %arg0, %c0_i32, %arg1, %c0_i32_0 : i32, i32, i32, i32
  }
  func.func @transform_1(%arg0: i32, %arg1: i32) -> (i32, i32, i32, i32) {
    %c0_i32 = arith.constant 0 : i32
    %c0_i32_0 = arith.constant 0 : i32
    %c0_i32_1 = arith.constant 0 : i32
    return %arg0, %c0_i32, %arg1, %c0_i32_0 : i32, i32, i32, i32
  }
  func.func @transform_2(%arg0: i32, %arg1: i32) -> (i32, i32, i32, i32) {
    %c0_i32 = arith.constant 0 : i32
    %c0_i32_0 = arith.constant 0 : i32
    %c0_i32_1 = arith.constant 0 : i32
    return %arg0, %arg1, %c0_i32, %c0_i32_0 : i32, i32, i32, i32
  }
  func.func @transform_3(%arg0: i32, %arg1: i32) -> (i32, i32, i32, i32) {
    %c0_i32 = arith.constant 0 : i32
    %c0_i32_0 = arith.constant 0 : i32
    %c0_i32_1 = arith.constant 0 : i32
    return %arg0, %arg1, %c0_i32, %c0_i32_0 : i32, i32, i32, i32
  }
  func.func @transform_4(%arg0: i32, %arg1: i32) -> (i32, i32, i32, i32) {
    %c0_i32 = arith.constant 0 : i32
    %c0_i32_0 = arith.constant 0 : i32
    %c0_i32_1 = arith.constant 0 : i32
    return %arg0, %arg1, %c0_i32, %c0_i32_0 : i32, i32, i32, i32
  }
}

</mosaic_0001>

<llo_original>
// kernel: tpu_custom_call.1
$region0: #{tpu_custom_call.1}
  #allocation0 [shape = 'u32[]', space=smem, size = 0x4, offset = 0x4, fixed_abs, tag = 'smem constant byte address 0x4 - core index']
  #allocation1 [shape = 'u32[144,128]{1,0:T(1,128)}', space=vmem, size = 0x12000, scoped, tag = 'internal scratch']
  %s0 = inlined_call_operand.hbm [shape: f32[2,4,2,128], index: 0, kind: input, shape index: {}]
  %s1 = inlined_call_operand.hbm [shape: s32[2,1,2,128], index: 1, kind: input, shape index: {}]
  %s2 = inlined_call_operand.hbm [shape: f32[2,1,2,128], index: 2, kind: output, shape index: {0}]
  %s3 = inlined_call_operand.hbm [shape: f32[2,1,2,128], index: 3, kind: output, shape index: {1}]
  %s4 = inlined_call_operand.hbm [shape: f32[2,1,2,128], index: 4, kind: output, shape index: {2}]
  %5 = xla_tuple %s2, %s3, %s4
  %s6 = sld [smem:[#allocation0]]
  $region65: #{tpu_custom_call.1} parent=0
    _
  %s8 = ssub.s32 1, %s6
  %s9 = scalar_select 0, %s8, %s6
  $region1: #{tpu_custom_call.1} parent=0
    #allocation2 [shape = 'u8[8192]{0}', space=vmem, size = 0x2000, scoped, tag = 'input window, operand 0']
    #allocation3 [shape = 's32[2]{0}', space=sflag, size = 0x8, scoped, tag = 'scoped memory for tpu_custom_call.1']
    #allocation4 [shape = 's32[2]{0}', space=sflag, size = 0x8, scoped, tag = 'scoped memory for tpu_custom_call.1']
    #allocation5 [shape = 'u8[2048]{0}', space=vmem, size = 0x800, scoped, tag = 'input window, operand 1']
    #allocation6 [shape = 's32[2]{0}', space=sflag, size = 0x8, scoped, tag = 'scoped memory for tpu_custom_call.1']
    #allocation7 [shape = 'u8[2048]{0}', space=vmem, size = 0x800, scoped, tag = 'output window, operand 0']
    #allocation8 [shape = 'u8[2048]{0}', space=vmem, size = 0x800, scoped, tag = 'output window, operand 1']
    #allocation9 [shape = 's32[2]{0}', space=sflag, size = 0x8, scoped, tag = 'scoped memory for tpu_custom_call.1']
    #allocation10 [shape = 'u8[2048]{0}', space=vmem, size = 0x800, scoped, tag = 'output window, operand 2']
    %10 = vsyncpa [#allocation3], 0
    %s11 = scalar_lea.sflag [#allocation3], 1
    %12 = vsyncpa %s11, 0
    %13 = vsyncpa [#allocation6], 0
    %s14 = scalar_lea.sflag [#allocation6], 1
    %15 = vsyncpa %s14, 0
    %16 = vsyncpa [#allocation4], 0
    %s17 = scalar_lea.sflag [#allocation4], 1
    %18 = vsyncpa %s17, 0
    %19 = vsyncpa [#allocation9], 0
    %s20 = scalar_lea.sflag [#allocation9], 1
    %21 = vsyncpa %s20, 0
    loop: start=0, step=1, limit=4
    $region2: #{tpu_custom_call.1} parent=1 // loop_pre_header
      _
    $region3: #{tpu_custom_call.1} parent=1 // loop_header
      %s23 = sphi 0, %s27
      %p24 = scmp.ge.s32.totalorder %s23, 4
      %s30 = sphi 0, %s42
      %s31 = sphi 0, %s38
      %s32 = sphi 0, %s30
      %s33 = sphi 0, %s31
      %s34 = sphi 0, %s32
      %s35 = sphi 0, %s33
      %s47 = sphi 0, %s49
      %s50 = sphi 0, %s47
      %s51 = sphi 0, %s50
      %s67 = sphi 0, %s51
      %s75 = sphi 0, %s77
      %s78 = sphi 0, %s75
      %s79 = sphi 0, %s78
      %s95 = sphi 0, %s79
      %s103 = sphi 0, %s105
      %s106 = sphi 0, %s103
      %s107 = sphi 0, %s106
      %s123 = sphi 0, %s107
      %s131 = sphi 0, %s133
      %s134 = sphi 0, %s131
      %s135 = sphi 0, %s134
      %s151 = sphi 0, %s135
      %s159 = sphi 0, %s161
      %s162 = sphi 0, %s159
      %s163 = sphi 0, %s162
      %s179 = sphi 0, %s163
    $region4: #{tpu_custom_call.1} parent=1 // loop_header_branch
      %26 = sbr.rel (%p24) target = $region8
    $region5: #{tpu_custom_call.1} parent=1 // loop_body
      %s28 = ssub.s32 %s23, 1
      %s29 = ssub.s32 %s23, 2
      %s36 = sadd.s32 1, %s31
      %p37 = scmp.ge.s32.totalorder %s36, 1
      %s38 = scalar_select %p37, 0, %s36
      %s39 = sadd.s32 1, %s30
      %s40 = scalar_select %p37, %s39, %s30
      %p41 = scmp.ge.s32.totalorder %s40, 2
      %s42 = scalar_select %p41, 0, %s40
      %s43 = ssub.s32 %s30, %s42
      %s44 = ssub.s32 %s31, %s38
      %s45 = sor.u32 %s43, %s44
      %p46 = scmp.eq.s32.totalorder %s45, 0
      %s48 = sadd.s32 %s47, 1
      %s49 = scalar_select %p46, %s47, %s48
      %p52 = pneg %p46
      %p53 = scmp.eq.s32.totalorder %s23, 1
      %p54 = por %p52, %p53
      %p55 = scmp.ne.s32.totalorder %s47, %s50
      %p56 = scmp.eq.s32.totalorder %s23, 0
      %p57 = por %p55, %p56
      %p58 = scmp.ne.s32.totalorder %s47, %s50
      %p59 = scmp.eq.s32.totalorder %s28, 1
      %p60 = por %p58, %p59
      %p61 = scmp.ne.s32.totalorder %s50, %s51
      %p62 = scmp.eq.s32.totalorder %s28, 0
      %p63 = por %p61, %p62
      %p64 = scmp.ne.s32.totalorder %s50, %s51
      %p65 = scmp.eq.s32.totalorder %s29, 1
      %p66 = por %p64, %p65
      %p68 = scmp.ne.s32.totalorder %s51, %s67
      %p69 = scmp.eq.s32.totalorder %s29, 0
      %p70 = por %p68, %p69
      %s71 = ssub.s32 %s30, %s42
      %s72 = ssub.s32 %s31, %s38
      %s73 = sor.u32 %s71, %s72
      %p74 = scmp.eq.s32.totalorder %s73, 0
      %s76 = sadd.s32 %s75, 1
      %s77 = scalar_select %p74, %s75, %s76
      %p80 = pneg %p74
      %p81 = scmp.eq.s32.totalorder %s23, 1
      %p82 = por %p80, %p81
      %p83 = scmp.ne.s32.totalorder %s75, %s78
      %p84 = scmp.eq.s32.totalorder %s23, 0
      %p85 = por %p83, %p84
      %p86 = scmp.ne.s32.totalorder %s75, %s78
      %p87 = scmp.eq.s32.totalorder %s28, 1
      %p88 = por %p86, %p87
      %p89 = scmp.ne.s32.totalorder %s78, %s79
      %p90 = scmp.eq.s32.totalorder %s28, 0
      %p91 = por %p89, %p90
      %p92 = scmp.ne.s32.totalorder %s78, %s79
      %p93 = scmp.eq.s32.totalorder %s29, 1
      %p94 = por %p92, %p93
      %p96 = scmp.ne.s32.totalorder %s79, %s95
      %p97 = scmp.eq.s32.totalorder %s29, 0
      %p98 = por %p96, %p97
      %s99 = ssub.s32 %s30, %s42
      %s100 = ssub.s32 %s31, %s38
      %s101 = sor.u32 %s99, %s100
      %p102 = scmp.eq.s32.totalorder %s101, 0
      %s104 = sadd.s32 %s103, 1
      %s105 = scalar_select %p102, %s103, %s104
      %p108 = pneg %p102
      %p109 = scmp.eq.s32.totalorder %s23, 1
      %p110 = por %p108, %p109
      %p111 = scmp.ne.s32.totalorder %s103, %s106
      %p112 = scmp.eq.s32.totalorder %s23, 0
      %p113 = por %p111, %p112
      %p114 = scmp.ne.s32.totalorder %s103, %s106
      %p115 = scmp.eq.s32.totalorder %s28, 1
      %p116 = por %p114, %p115
      %p117 = scmp.ne.s32.totalorder %s106, %s107
      %p118 = scmp.eq.s32.totalorder %s28, 0
      %p119 = por %p117, %p118
      %p120 = scmp.ne.s32.totalorder %s106, %s107
      %p121 = scmp.eq.s32.totalorder %s29, 1
      %p122 = por %p120, %p121
      %p124 = scmp.ne.s32.totalorder %s107, %s123
      %p125 = scmp.eq.s32.totalorder %s29, 0
      %p126 = por %p124, %p125
      %s127 = ssub.s32 %s30, %s42
      %s128 = ssub.s32 %s31, %s38
      %s129 = sor.u32 %s127, %s128
      %p130 = scmp.eq.s32.totalorder %s129, 0
      %s132 = sadd.s32 %s131, 1
      %s133 = scalar_select %p130, %s131, %s132
      %p136 = pneg %p130
      %p137 = scmp.eq.s32.totalorder %s23, 1
      %p138 = por %p136, %p137
      %p139 = scmp.ne.s32.totalorder %s131, %s134
      %p140 = scmp.eq.s32.totalorder %s23, 0
      %p141 = por %p139, %p140
      %p142 = scmp.ne.s32.totalorder %s131, %s134
      %p143 = scmp.eq.s32.totalorder %s28, 1
      %p144 = por %p142, %p143
      %p145 = scmp.ne.s32.totalorder %s134, %s135
      %p146 = scmp.eq.s32.totalorder %s28, 0
      %p147 = por %p145, %p146
      %p148 = scmp.ne.s32.totalorder %s134, %s135
      %p149 = scmp.eq.s32.totalorder %s29, 1
      %p150 = por %p148, %p149
      %p152 = scmp.ne.s32.totalorder %s135, %s151
      %p153 = scmp.eq.s32.totalorder %s29, 0
      %p154 = por %p152, %p153
      %s155 = ssub.s32 %s30, %s42
      %s156 = ssub.s32 %s31, %s38
      %s157 = sor.u32 %s155, %s156
      %p158 = scmp.eq.s32.totalorder %s157, 0
      %s160 = sadd.s32 %s159, 1
      %s161 = scalar_select %p158, %s159, %s160
      %p164 = pneg %p158
      %p165 = scmp.eq.s32.totalorder %s23, 1
      %p166 = por %p164, %p165
      %p167 = scmp.ne.s32.totalorder %s159, %s162
      %p168 = scmp.eq.s32.totalorder %s23, 0
      %p169 = por %p167, %p168
      %p170 = scmp.ne.s32.totalorder %s159, %s162
      %p171 = scmp.eq.s32.totalorder %s28, 1
      %p172 = por %p170, %p171
      %p173 = scmp.ne.s32.totalorder %s162, %s163
      %p174 = scmp.eq.s32.totalorder %s28, 0
      %p175 = por %p173, %p174
      %p176 = scmp.ne.s32.totalorder %s162, %s163
      %p177 = scmp.eq.s32.totalorder %s29, 1
      %p178 = por %p176, %p177
      %p180 = scmp.ne.s32.totalorder %s163, %s179
      %p181 = scmp.eq.s32.totalorder %s29, 0
      %p182 = por %p180, %p181
      %p183 = scmp.le.s32.totalorder 1, %s23
      %p184 = scmp.lt.s32.totalorder %s23, 3
      %p185 = pnand %p183, %p184
      %p186 = pneg %p185
      // Predicated region
      $region9: #{tpu_custom_call.1} parent=5 // pred_check
        _
      $region10: #{tpu_custom_call.1} parent=5 // pred_check_branch
        %188 = sbr.rel (%p185) target = $region12
      $region11: #{tpu_custom_call.1} parent=5 // pred_region
        %s189 = ssub.s32 %s23, 1
      $region12: #{tpu_custom_call.1} parent=5 // pred_fallthru
        _
      %p190 = scmp.lt.s32.totalorder %s23, 2
      // Predicated region
      $region13: #{tpu_custom_call.1} parent=5 // pred_check
        %p191 = pneg %p190
      $region14: #{tpu_custom_call.1} parent=5 // pred_check_branch
        %193 = sbr.rel (%p191) target = $region16
      $region15: #{tpu_custom_call.1} parent=5 // pred_region
        // Predicated region
        $region17: #{tpu_custom_call.1} parent=15 // pred_check
          %p194 = pneg %p57
        $region18: #{tpu_custom_call.1} parent=15 // pred_check_branch
          %196 = sbr.rel (%p194) target = $region20
        $region19: #{tpu_custom_call.1} parent=15 // pred_region
          %s197 = sand.u32 %s47, 1
          %s198 = scalar_lea.sflag [#allocation3], %s197
          %s199 = sand.u32 %s47, 1
          %s200 = smul.addr %s199, 8
          %s201 = scalar_lea.vmem [#allocation2], %s200
          %s203 = ssub.s32 128, 128
          %204 = vsyncadd %s198, %s203
          %s205 = smul.addr %s30, 4
          %s206 = sadd.s32 %s31, %s205
          %s207 = smul.addr %s206, 32
          %s208 = scalar_lea.hbm %s0, %s207
          %s209 = sshll.u32 %s201, 4
          %s210 = int_to_ptr.vmem [resolvable:$true] %s209
          %215 = dma.hbm_to_vmem [thread:$0]  %s208, 128, %s210, %s198, 32, 32, 2
        $region20: #{tpu_custom_call.1} parent=15 // pred_fallthru
          _
        // Predicated region
        $region21: #{tpu_custom_call.1} parent=15 // pred_check
          %p216 = pneg %p85
        $region22: #{tpu_custom_call.1} parent=15 // pred_check_branch
          %218 = sbr.rel (%p216) target = $region24
        $region23: #{tpu_custom_call.1} parent=15 // pred_region
          %s219 = sand.u32 %s75, 1
          %s220 = scalar_lea.sflag [#allocation6], %s219
          %s221 = sand.u32 %s75, 1
          %s222 = smul.addr %s221, 2
          %s223 = scalar_lea.vmem [#allocation5], %s222
          %s225 = ssub.s32 32, 32
          %226 = vsyncadd %s220, %s225
          %s227 = sadd.s32 %s31, %s30
          %s228 = smul.addr %s227, 32
          %s229 = scalar_lea.hbm %s1, %s228
          %s231 = sshll.u32 %s223, 4
          %s232 = int_to_ptr.vmem [resolvable:$true] %s231
          %234 = dma.hbm_to_vmem [thread:$0]  %s229, 32, %s232, %s220
        $region24: #{tpu_custom_call.1} parent=15 // pred_fallthru
          _
      $region16: #{tpu_custom_call.1} parent=5 // pred_fallthru
        _
      %p235 = scmp.le.s32.totalorder 1, %s23
      %p236 = scmp.lt.s32.totalorder %s23, 3
      %p237 = pnand %p235, %p236
      %p238 = pneg %p237
      // Predicated region
      $region25: #{tpu_custom_call.1} parent=5 // pred_check
        _
      $region26: #{tpu_custom_call.1} parent=5 // pred_check_branch
        %240 = sbr.rel (%p237) target = $region28
      $region27: #{tpu_custom_call.1} parent=5 // pred_region
        %s241 = ssub.s32 %s23, 1
        %s242 = sand.u32 %s50, 1
        %s243 = scalar_lea.sflag [#allocation3], %s242
        %s244 = sand.u32 %s50, 1
        %s245 = smul.addr %s244, 8
        %s246 = scalar_lea.vmem [#allocation2], %s245
        // Predicated region
        $region29: #{tpu_custom_call.1} parent=27 // pred_check
          %p247 = pneg %p63
        $region30: #{tpu_custom_call.1} parent=27 // pred_check_branch
          %249 = sbr.rel (%p247) target = $region32
        $region31: #{tpu_custom_call.1} parent=27 // pred_region
          %250 = dma.done %s243, 128
        $region32: #{tpu_custom_call.1} parent=27 // pred_fallthru
          _
        %s251 = sand.u32 %s78, 1
        %s252 = scalar_lea.sflag [#allocation6], %s251
        %s253 = sand.u32 %s78, 1
        %s254 = smul.addr %s253, 2
        %s255 = scalar_lea.vmem [#allocation5], %s254
        // Predicated region
        $region33: #{tpu_custom_call.1} parent=27 // pred_check
          %p256 = pneg %p91
        $region34: #{tpu_custom_call.1} parent=27 // pred_check_branch
          %258 = sbr.rel (%p256) target = $region36
        $region35: #{tpu_custom_call.1} parent=27 // pred_region
          %259 = dma.done %s252, 32
        $region36: #{tpu_custom_call.1} parent=27 // pred_fallthru
          _
        %s260 = sand.u32 %s50, 1
        %s261 = scalar_lea.sflag [#allocation3], %s260
        %s262 = sand.u32 %s50, 1
        %s263 = smul.addr %s262, 8
        %s264 = scalar_lea.vmem [#allocation2], %s263
        %p265 = pneg %p63
        %p266 = pneg %p60
        %s267 = sand.u32 %s78, 1
        %s268 = scalar_lea.sflag [#allocation6], %s267
        %s269 = sand.u32 %s78, 1
        %s270 = smul.addr %s269, 2
        %s271 = scalar_lea.vmem [#allocation5], %s270
        %p272 = pneg %p91
        %p273 = pneg %p88
        %p274 = pneg %p119
        %p275 = pneg %p116
        %s276 = sand.u32 %s106, 1
        %s277 = scalar_lea.sflag [#allocation4], %s276
        %s278 = sand.u32 %s106, 1
        %s279 = smul.addr %s278, 2
        %s280 = scalar_lea.vmem [#allocation7], %s279
        %p281 = pneg %p147
        %p282 = pneg %p144
        %s283 = sand.u32 %s28, 1
        %s284 = scalar_lea.sflag [#allocation9], %s283
        %s285 = sand.u32 %s134, 1
        %s286 = smul.addr %s285, 2
        %s287 = scalar_lea.vmem [#allocation8], %s286
        %p288 = pneg %p175
        %p289 = pneg %p172
        %s290 = sand.u32 %s28, 1
        %s291 = scalar_lea.sflag [#allocation9], %s290
        %s292 = sand.u32 %s162, 1
        %s293 = smul.addr %s292, 2
        %s294 = scalar_lea.vmem [#allocation10], %s293
        %v295 = vld [vmem:[%s246] sm:$0x3]
        %v296 = vld [vmem:[%s246 + $0x2] sm:$0x3]
        %v297 = vld [vmem:[%s246 + $0x4] sm:$0x3]
        %v298 = vld [vmem:[%s246 + $0x6] sm:$0x3]
        %vm299 = vcmask 1041408
        %v300 = vsel %vm299, %v296, -inf
        %v301 = vsel %vm299, %v297, -inf
        %v302 = vsel %vm299, %v298, -inf
        %v303 = vmax.f32 %v300, %v301
        %v304 = vmax.f32 %v303, %v302
        %vm305 = vcmp.gt.f32.partialorder %v304, %v295
        %v306 = vsel %vm305, %v296, 0.0
        %v307 = vld [vmem:[%s255] sm:$0x3]
        %vm308 = vcmp.gt.s32.totalorder %v307, 0
        %v309 = vsel %vm308, 1, 0
        %v310 = vcvt.s32.f32 %v309
        %v311 = vand.u32 2147483647, %v306
        %v312 = vsub.f32 0.0, %v311
        %v313 = vmul.f32 %v312, 1.442695
        %v314 = vpow.pop %v313
        %v315 = vmax.f32 %v306, 0.0
        %v316 = vmul.f32 %v306, %v310
        %v317 = vsub.f32 %v315, %v316
        %v318 = vadd.f32 %v314, 1.0
        %v319 = vlog2.pop %v318
        %v320 = vmul.f32 %v319, 0.6931472
        %v321 = vmul.f32 -0.5, %v314
        %v322 = vadd.f32 %v321, 1.0
        %v323 = vmul.f32 %v322, %v314
        %v324 = vand.u32 2147483647, %v314
        %vm325 = vcmp.lt.f32.partialorder %v324, 0.0004427343
        %v326 = vsel %vm325, %v323, %v320
        %v327 = vadd.f32 %v317, %v326
        %v328 = vadd.f32 %v314, 1.0
        %v329 = vrcp.pop %v328
        %vm330 = vcmp.ge.f32.partialorder %v306, 0.0
        %v331 = vmul.f32 %v314, %v329
        %v332 = vsel %vm330, %v329, %v331
        %333 = vst [vmem:[%s280] sm:$0x3] %v327
        %v334 = vmul.f32 %v332, %v310
        %335 = vst [vmem:[%s287] sm:$0x3] %v334
        %v336 = vadd.f32 %v332, %v310
        %337 = vst [vmem:[%s294] sm:$0x3] %v336
        %s338 = sand.u32 %s106, 1
        %s339 = scalar_lea.sflag [#allocation4], %s338
        %s340 = sand.u32 %s106, 1
        %s341 = smul.addr %s340, 2
        %s342 = scalar_lea.vmem [#allocation7], %s341
        %s343 = sand.u32 %s28, 1
        %s344 = scalar_lea.sflag [#allocation9], %s343
        %s345 = sand.u32 %s134, 1
        %s346 = smul.addr %s345, 2
        %s347 = scalar_lea.vmem [#allocation8], %s346
        %s348 = sand.u32 %s28, 1
        %s349 = scalar_lea.sflag [#allocation9], %s348
        %s350 = sand.u32 %s162, 1
        %s351 = smul.addr %s350, 2
        %s352 = scalar_lea.vmem [#allocation10], %s351
        // Predicated region
        $region37: #{tpu_custom_call.1} parent=27 // pred_check
          %p353 = pneg %p116
        $region38: #{tpu_custom_call.1} parent=27 // pred_check_branch
          %355 = sbr.rel (%p353) target = $region40
        $region39: #{tpu_custom_call.1} parent=27 // pred_region
          %s357 = ssub.s32 32, 32
          %358 = vsyncadd %s339, %s357
          %s359 = sadd.s32 %s33, %s32
          %s360 = smul.addr %s359, 32
          %s361 = scalar_lea.hbm %s2, %s360
          %s363 = sshll.u32 %s342, 4
          %s364 = int_to_ptr.vmem [resolvable:$true] %s363
          %366 = dma.vmem_to_hbm [thread:$0]  %s364, 32, %s361, %s339
        $region40: #{tpu_custom_call.1} parent=27 // pred_fallthru
          _
        // Predicated region
        $region41: #{tpu_custom_call.1} parent=27 // pred_check
          %p367 = pneg %p144
        $region42: #{tpu_custom_call.1} parent=27 // pred_check_branch
          %369 = sbr.rel (%p367) target = $region44
        $region43: #{tpu_custom_call.1} parent=27 // pred_region
          %s371 = ssub.s32 32, 32
          %372 = vsyncadd %s344, %s371
          %s373 = sadd.s32 %s33, %s32
          %s374 = smul.addr %s373, 32
          %s375 = scalar_lea.hbm %s3, %s374
          %s377 = sshll.u32 %s347, 4
          %s378 = int_to_ptr.vmem [resolvable:$true] %s377
          %380 = dma.vmem_to_hbm [thread:$0]  %s378, 32, %s375, %s344
        $region44: #{tpu_custom_call.1} parent=27 // pred_fallthru
          _
        // Predicated region
        $region45: #{tpu_custom_call.1} parent=27 // pred_check
          %p381 = pneg %p172
        $region46: #{tpu_custom_call.1} parent=27 // pred_check_branch
          %383 = sbr.rel (%p381) target = $region48
        $region47: #{tpu_custom_call.1} parent=27 // pred_region
          %s385 = ssub.s32 32, 32
          %386 = vsyncadd %s349, %s385
          %s387 = sadd.s32 %s33, %s32
          %s388 = smul.addr %s387, 32
          %s389 = scalar_lea.hbm %s4, %s388
          %s391 = sshll.u32 %s352, 4
          %s392 = int_to_ptr.vmem [resolvable:$true] %s391
          %394 = dma.vmem_to_hbm [thread:$0]  %s392, 32, %s389, %s349
        $region48: #{tpu_custom_call.1} parent=27 // pred_fallthru
          _
      $region28: #{tpu_custom_call.1} parent=5 // pred_fallthru
        _
      %p395 = scmp.le.s32.totalorder 2, %s23
      // Predicated region
      $region49: #{tpu_custom_call.1} parent=5 // pred_check
        %p396 = pneg %p395
      $region50: #{tpu_custom_call.1} parent=5 // pred_check_branch
        %398 = sbr.rel (%p396) target = $region52
      $region51: #{tpu_custom_call.1} parent=5 // pred_region
        %s399 = ssub.s32 %s23, 2
        // Predicated region
        $region53: #{tpu_custom_call.1} parent=51 // pred_check
          %p400 = pneg %p122
        $region54: #{tpu_custom_call.1} parent=51 // pred_check_branch
          %402 = sbr.rel (%p400) target = $region56
        $region55: #{tpu_custom_call.1} parent=51 // pred_region
          %s403 = sand.u32 %s107, 1
          %s404 = scalar_lea.sflag [#allocation4], %s403
          %s405 = sand.u32 %s107, 1
          %s406 = smul.addr %s405, 2
          %s407 = scalar_lea.vmem [#allocation7], %s406
          %408 = dma.done %s404, 32
        $region56: #{tpu_custom_call.1} parent=51 // pred_fallthru
          _
        // Predicated region
        $region57: #{tpu_custom_call.1} parent=51 // pred_check
          %p409 = pneg %p150
        $region58: #{tpu_custom_call.1} parent=51 // pred_check_branch
          %411 = sbr.rel (%p409) target = $region60
        $region59: #{tpu_custom_call.1} parent=51 // pred_region
          %s412 = sand.u32 %s29, 1
          %s413 = scalar_lea.sflag [#allocation9], %s412
          %s414 = sand.u32 %s135, 1
          %s415 = smul.addr %s414, 2
          %s416 = scalar_lea.vmem [#allocation8], %s415
          %417 = dma.done %s413, 32
        $region60: #{tpu_custom_call.1} parent=51 // pred_fallthru
          _
        // Predicated region
        $region61: #{tpu_custom_call.1} parent=51 // pred_check
          %p418 = pneg %p178
        $region62: #{tpu_custom_call.1} parent=51 // pred_check_branch
          %420 = sbr.rel (%p418) target = $region64
        $region63: #{tpu_custom_call.1} parent=51 // pred_region
          %s421 = sand.u32 %s29, 1
          %s422 = scalar_lea.sflag [#allocation9], %s421
          %s423 = sand.u32 %s163, 1
          %s424 = smul.addr %s423, 2
          %s425 = scalar_lea.vmem [#allocation10], %s424
          %426 = dma.done %s422, 32
        $region64: #{tpu_custom_call.1} parent=51 // pred_fallthru
          _
      $region52: #{tpu_custom_call.1} parent=5 // pred_fallthru
        _
    $region6: #{tpu_custom_call.1} parent=1 // loop_footer
      %s27 = sadd.s32 1, %s23
    $region7: #{tpu_custom_call.1} parent=1 // loop_footer_branch
      %22 = sbr.rel target = $region3
    $region8: #{tpu_custom_call.1} parent=1 // loop_exit
      _
    %427 = vsyncpa [#allocation3], 1
    %s428 = scalar_lea.sflag [#allocation3], 1
    %429 = vsyncpa %s428, 1
    %430 = vsyncpa [#allocation6], 1
    %s431 = scalar_lea.sflag [#allocation6], 1
    %432 = vsyncpa %s431, 1
    %433 = vsyncpa [#allocation4], 1
    %s434 = scalar_lea.sflag [#allocation4], 1
    %435 = vsyncpa %s434, 1
    %436 = vsyncpa [#allocation9], 1
    %s437 = scalar_lea.sflag [#allocation9], 1
    %438 = vsyncpa %s437, 1

</llo_original>
